<compile_context>
chip_gen: v6e
topology: v6e:2x2x1
jax: 0.10.0
libtpu: 0.0.40
codegen_flags: <defaults>
</compile_context>

<pallas_src>
import functools

import jax
import jax.numpy as jnp
from jax.experimental import pallas as pl
from jax.experimental.pallas import tpu as pltpu

# ----- hypothesis.default replacements (synthetic, deterministic) -----------
DEPENDENT_DELIMITER = ","
INDEPENDENT_DELIMITER = "|"
DEFAULT_BATCH_SIZE = 8

# ----- problem sizes ---------------------------------------------------------
THETA_DIM = 4
X_DIM = 8
IN_DIM = THETA_DIM + X_DIM    # concat(theta, x)
HIDDEN = 32


# ----------------------------------------------------------------------------
# Pallas kernel: in-kernel permutation + ONE fused MLP pass + BCE reduction
# ----------------------------------------------------------------------------
def _criterion_kernel(perm_ref, x_ref, params_ref, loss_ref, *,
                      batch_size, group_col_ranges, n_w1_rows, clamp_log):
    b = batch_size
    x_dep = x_ref[...]                       # (B, D) f32, last column is ones
    d = x_dep.shape[1]

    # --- build the independently-shuffled batch inside the kernel -----------
    # onehot_g[i, k] = (k == perm_g[i])  =>  (onehot_g @ x)[i, :] = x[perm_g[i], :]
    col_ids_b = jax.lax.broadcasted_iota(jnp.int32, (b, b), 1)
    col_ids_d = jax.lax.broadcasted_iota(jnp.int32, (b, d), 1)
    x_ind = x_dep        # columns outside all groups (incl. ones col) stay put
    for g, ranges in enumerate(group_col_ranges):
        perm_g = perm_ref[:, g:g + 1]                                 # (B, 1)
        onehot = jnp.where(col_ids_b == perm_g, 1.0, 0.0)             # (B, B)
        permuted = jnp.dot(onehot, x_dep,
                           preferred_element_type=jnp.float32)        # (B, D)
        mask = col_ids_d < 0                                          # all False
        for (start, end) in ranges:
            mask = jnp.logical_or(mask,
                                  (col_ids_d >= start) & (col_ids_d < end))
        x_ind = jnp.where(mask, permuted, x_ind)

    # --- stack dependent + independent rows: one MLP pass for both ----------
    x_all = jnp.concatenate([x_dep, x_ind], axis=0)                   # (2B, D)

    w1 = params_ref[0:n_w1_rows, :]                                   # (D, H)
    w2_row = params_ref[n_w1_rows:n_w1_rows + 1, :]                   # (1, H)
    b2 = params_ref[n_w1_rows + 1:n_w1_rows + 2, 0:1]                 # (1, 1)

    h = jnp.dot(x_all, w1, preferred_element_type=jnp.float32)
    h = jnp.maximum(h, 0.0)                                           # ReLU
    # output layer as VPU multiply + lane reduction (avoids an N=1 MXU pass)
    z = jnp.sum(h * w2_row, axis=-1, keepdims=True) + b2              # (2B, 1)

    # --- BCE directly from logits --------------------------------------------
    #   rows <  B (dependent,   target 1): -log sigmoid(z)      = softplus(-z)
    #   rows >= B (independent, target 0): -log(1 - sigmoid(z)) = softplus(+z)
    row_ids = jax.lax.broadcasted_iota(jnp.int32, z.shape, 0)
    arg = jnp.where(row_ids < b, -z, z)
    softplus = jnp.maximum(arg, 0.0) + jnp.log(1.0 + jnp.exp(-jnp.abs(arg)))
    if clamp_log:   # torch.nn.BCELoss clamps log terms at -100
        softplus = jnp.minimum(softplus, 100.0)

    # mean over B for each of the two terms == total sum / B
    loss_ref[0] = jnp.sum(softplus) / b


def criterion_pallas(perm_t, x_dep_aug, packed_params, *,
                     group_col_ranges, n_w1_rows, clamp_log):
    b = x_dep_aug.shape[0]
    kernel = functools.partial(
        _criterion_kernel,
        batch_size=b,
        group_col_ranges=group_col_ranges,
        n_w1_rows=n_w1_rows,
        clamp_log=clamp_log)
    vmem = pl.BlockSpec(memory_space=pltpu.MemorySpace.VMEM)
    return pl.pallas_call(
        kernel,
        out_shape=jax.ShapeDtypeStruct((1,), jnp.float32),
        in_specs=[vmem, vmem, vmem],
        out_specs=pl.BlockSpec(memory_space=pltpu.MemorySpace.SMEM),
    )(perm_t, x_dep_aug, packed_params)


# ----------------------------------------------------------------------------
# BaseCriterion re-implementation (only RNG / parameter packing stays in JAX)
# ----------------------------------------------------------------------------
class BaseCriterionJax:
    def __init__(self, params, denominator, batch_size=DEFAULT_BATCH_SIZE,
                 logits=False):
        w1, b1, w2, b2 = params
        hidden = w1.shape[1]
        self.logits = logits
        self.batch_size = batch_size
        self.independent_random_variables = \
            self._derive_independent_random_variables(denominator)
        self.random_variables = self._derive_random_variables(denominator)
        # Packed parameter buffer: [w1 ; b1 ; w2_row ; b2_row]  (bias-folded)
        self.n_w1_rows = w1.shape[0] + 1
        self.packed_params = jnp.concatenate([
            w1.astype(jnp.float32),
            b1.reshape(1, hidden).astype(jnp.float32),
            w2.reshape(1, hidden).astype(jnp.float32),
            jnp.broadcast_to(b2.reshape(1, 1).astype(jnp.float32), (1, hidden)),
        ], axis=0)

    @staticmethod
    def _derive_random_variables(denominator):
        rvs = denominator.replace(DEPENDENT_DELIMITER, " ") \
                         .replace(INDEPENDENT_DELIMITER, " ").split(" ")
        rvs.sort()
        return rvs

    @staticmethod
    def _derive_independent_random_variables(denominator):
        groups = denominator.split(INDEPENDENT_DELIMITER)
        return [g.split(DEPENDENT_DELIMITER) for g in groups]

    def variables(self):
        return self.random_variables

    def independent_variables(self):
        return self.independent_random_variables

    def forward(self, rng_key, **kwargs):
        b = self.batch_size
        # Concatenation order = sorted random-variable order (synthetic estimator).
        order = self.random_variables
        col_range, off = {}, 0
        for v in order:
            w = kwargs[v].shape[1]
            col_range[v] = (off, off + w)
            off += w

        # Dependent-pass activation with the bias column folded in.
        ones = jnp.ones((b, 1), jnp.float32)
        x_dep_aug = jnp.concatenate(
            [kwargs[v].astype(jnp.float32) for v in order] + [ones], axis=1)

        # One permutation per independent group (torch.randperm equivalent);
        # the gather itself happens inside the kernel.
        # TODO(synk): torch.randperm RNG stream is host-side; jax.random stays
        #             outside the kernel (only the index vectors are passed in).
        perms, group_col_ranges = [], []
        for group in self.independent_random_variables:
            rng_key, sub = jax.random.split(rng_key)
            perms.append(jax.random.permutation(sub, b))
            group_col_ranges.append(tuple(col_range[v] for v in group))
        perm_t = jnp.stack(perms, axis=1).astype(jnp.int32)        # (B, G)

        return criterion_pallas(
            perm_t, x_dep_aug, self.packed_params,
            group_col_ranges=tuple(group_col_ranges),
            n_w1_rows=self.n_w1_rows,
            clamp_log=not self.logits)[0]


# ----------------------------------------------------------------------------
# Pure-JAX reference (for correctness check)
# ----------------------------------------------------------------------------
def reference_loss(x_dep, x_ind, w1, b1, w2, b2, clamp_log=True):
    def logit(x):
        h = jnp.maximum(x @ w1 + b1, 0.0)
        return h @ w2 + b2

    def bce_from_logit(z, sign):
        a = sign * z
        sp = jnp.maximum(a, 0.0) + jnp.log1p(jnp.exp(-jnp.abs(a)))
        if clamp_log:
            sp = jnp.minimum(sp, 100.0)
        return jnp.mean(sp)

    z_dep = logit(x_dep)
    z_ind = logit(x_ind)
    return bce_from_logit(z_dep, -1.0) + bce_from_logit(z_ind, 1.0)


# ----------------------------------------------------------------------------
if __name__ == "__main__":
    key = jax.random.PRNGKey(0)
    k_theta, k_x, k_w1, k_b1, k_w2, k_b2, k_perm = jax.random.split(key, 7)

    B = DEFAULT_BATCH_SIZE
    theta = jax.random.normal(k_theta, (B, THETA_DIM), jnp.float32)
    x = jax.random.normal(k_x, (B, X_DIM), jnp.float32)

    # deterministic synthetic estimator parameters
    w1 = 0.1 * jax.random.normal(k_w1, (IN_DIM, HIDDEN), jnp.float32)
    b1 = 0.1 * jax.random.normal(k_b1, (1, HIDDEN), jnp.float32)
    w2 = 0.1 * jax.random.normal(k_w2, (HIDDEN, 1), jnp.float32)
    b2 = 0.1 * jax.random.normal(k_b2, (1, 1), jnp.float32)

    criterion = BaseCriterionJax(params=(w1, b1, w2, b2),
                                 denominator="inputs|outputs",
                                 batch_size=B, logits=False)

    loss = criterion.forward(k_perm, inputs=theta, outputs=x)
    loss = jax.block_until_ready(loss)

    # ---- sanity-check against pure-JAX reference with the same permutations
    kref = k_perm
    shuffled = {"inputs": theta, "outputs": x}
    for group in criterion.independent_variables():
        kref, sub = jax.random.split(kref)
        perm = jax.random.permutation(sub, B)
        for v in group:
            shuffled[v] = shuffled[v][perm]
    x_dep = jnp.concatenate([theta, x], axis=1)
    x_ind = jnp.concatenate([shuffled["inputs"], shuffled["outputs"]], axis=1)
    ref = reference_loss(x_dep, x_ind, w1, b1, w2, b2, clamp_log=True)

    assert jnp.allclose(loss, ref, atol=1e-4, rtol=1e-4), (loss, ref)
    print("KERNEL_OK")
</pallas_src>

<mosaic_0001>
module attributes {stable_mosaic.version = 11 : i64} {
  func.func @_criterion_kernel(%arg0: memref<8x2xi32, #tpu.memory_space<vmem>>, %arg1: memref<8x13xf32, #tpu.memory_space<vmem>>, %arg2: memref<15x32xf32, #tpu.memory_space<vmem>>, %arg3: memref<1xf32, #tpu.memory_space<smem>>) attributes {dimension_semantics = [], scalar_prefetch = 0 : i64, scratch_operands = 0 : i64, tpu.core_type = #tpu.core_type<tc>} {
    %c0 = arith.constant 0 : index
    %c0_0 = arith.constant 0 : index
    %0 = vector.load %arg1[%c0, %c0_0] : memref<8x13xf32, #tpu.memory_space<vmem>>, vector<8x13xf32>
    %1 = tpu.iota {dimensions = array<i32: 1>} : vector<8x8xi32>
    %2 = tpu.iota {dimensions = array<i32: 1>} : vector<8x13xi32>
    %c0_1 = arith.constant 0 : index
    %c0_2 = arith.constant 0 : index
    %3 = vector.load %arg0[%c0_1, %c0_2] : memref<8x2xi32, #tpu.memory_space<vmem>>, vector<8x1xi32>
    %4 = vector.broadcast %3 : vector<8x1xi32> to vector<8x8xi32>
    %5 = arith.cmpi eq, %1, %4 : vector<8x8xi32>
    %cst = arith.constant 1.000000e+00 : f32
    %cst_3 = arith.constant 0.000000e+00 : f32
    %6 = vector.broadcast %cst : f32 to vector<8x8xf32>
    %7 = vector.broadcast %cst_3 : f32 to vector<8x8xf32>
    %8 = arith.select %5, %6, %7 : vector<8x8xi1>, vector<8x8xf32>
    %cst_4 = arith.constant dense<0.000000e+00> : vector<8x13xf32>
    %9 = tpu.matmul %8, %0, %cst_4 {dimension_numbers = #tpu.dot_dimension_numbers<[1], [0], [0], [1], [0, 0, 1, 1], [], []>} : vector<8x8xf32>, vector<8x13xf32>, vector<8x13xf32> -> vector<8x13xf32>
    %c0_i32 = arith.constant 0 : i32
    %10 = vector.broadcast %c0_i32 : i32 to vector<8x13xi32>
    %11 = arith.cmpi slt, %2, %10 : vector<8x13xi32>
    %c0_i32_5 = arith.constant 0 : i32
    %12 = vector.broadcast %c0_i32_5 : i32 to vector<8x13xi32>
    %13 = arith.cmpi sge, %2, %12 : vector<8x13xi32>
    %c4_i32 = arith.constant 4 : i32
    %14 = vector.broadcast %c4_i32 : i32 to vector<8x13xi32>
    %15 = arith.cmpi slt, %2, %14 : vector<8x13xi32>
    %16 = arith.andi %13, %15 : vector<8x13xi1>
    %17 = arith.ori %11, %16 : vector<8x13xi1>
    %18 = arith.select %17, %9, %0 : vector<8x13xi1>, vector<8x13xf32>
    %c0_6 = arith.constant 0 : index
    %c1 = arith.constant 1 : index
    %19 = vector.load %arg0[%c0_6, %c1] : memref<8x2xi32, #tpu.memory_space<vmem>>, vector<8x1xi32>
    %20 = vector.broadcast %19 : vector<8x1xi32> to vector<8x8xi32>
    %21 = arith.cmpi eq, %1, %20 : vector<8x8xi32>
    %cst_7 = arith.constant 1.000000e+00 : f32
    %cst_8 = arith.constant 0.000000e+00 : f32
    %22 = vector.broadcast %cst_7 : f32 to vector<8x8xf32>
    %23 = vector.broadcast %cst_8 : f32 to vector<8x8xf32>
    %24 = arith.select %21, %22, %23 : vector<8x8xi1>, vector<8x8xf32>
    %cst_9 = arith.constant dense<0.000000e+00> : vector<8x13xf32>
    %25 = tpu.matmul %24, %0, %cst_9 {dimension_numbers = #tpu.dot_dimension_numbers<[1], [0], [0], [1], [0, 0, 1, 1], [], []>} : vector<8x8xf32>, vector<8x13xf32>, vector<8x13xf32> -> vector<8x13xf32>
    %c0_i32_10 = arith.constant 0 : i32
    %26 = vector.broadcast %c0_i32_10 : i32 to vector<8x13xi32>
    %27 = arith.cmpi slt, %2, %26 : vector<8x13xi32>
    %c4_i32_11 = arith.constant 4 : i32
    %28 = vector.broadcast %c4_i32_11 : i32 to vector<8x13xi32>
    %29 = arith.cmpi sge, %2, %28 : vector<8x13xi32>
    %c12_i32 = arith.constant 12 : i32
    %30 = vector.broadcast %c12_i32 : i32 to vector<8x13xi32>
    %31 = arith.cmpi slt, %2, %30 : vector<8x13xi32>
    %32 = arith.andi %29, %31 : vector<8x13xi1>
    %33 = arith.ori %27, %32 : vector<8x13xi1>
    %34 = arith.select %33, %25, %18 : vector<8x13xi1>, vector<8x13xf32>
    %35 = tpu.concatenate %0, %34 in 0 : vector<8x13xf32>, vector<8x13xf32> -> vector<16x13xf32>
    %c0_12 = arith.constant 0 : index
    %c0_13 = arith.constant 0 : index
    %36 = vector.load %arg2[%c0_12, %c0_13] : memref<15x32xf32, #tpu.memory_space<vmem>>, vector<13x32xf32>
    %c13 = arith.constant 13 : index
    %c0_14 = arith.constant 0 : index
    %37 = vector.load %arg2[%c13, %c0_14] : memref<15x32xf32, #tpu.memory_space<vmem>>, vector<1x32xf32>
    %c14 = arith.constant 14 : index
    %c0_15 = arith.constant 0 : index
    %38 = vector.load %arg2[%c14, %c0_15] : memref<15x32xf32, #tpu.memory_space<vmem>>, vector<1x1xf32>
    %cst_16 = arith.constant dense<0.000000e+00> : vector<16x32xf32>
    %39 = tpu.matmul %35, %36, %cst_16 {dimension_numbers = #tpu.dot_dimension_numbers<[1], [0], [0], [1], [0, 0, 1, 1], [], []>} : vector<16x13xf32>, vector<13x32xf32>, vector<16x32xf32> -> vector<16x32xf32>
    %cst_17 = arith.constant 0.000000e+00 : f32
    %40 = vector.broadcast %cst_17 : f32 to vector<16x32xf32>
    %41 = arith.maximumf %39, %40 : vector<16x32xf32>
    %42 = vector.broadcast %37 : vector<1x32xf32> to vector<16x32xf32>
    %43 = arith.mulf %41, %42 : vector<16x32xf32>
    %cst_18 = arith.constant dense<0.000000e+00> : vector<16xf32>
    %44 = vector.multi_reduction <add>, %43, %cst_18 [1] : vector<16x32xf32> to vector<16xf32>
    %45 = vector.shape_cast %44 : vector<16xf32> to vector<16x1xf32>
    %46 = vector.broadcast %38 : vector<1x1xf32> to vector<16x1xf32>
    %47 = arith.addf %45, %46 : vector<16x1xf32>
    %48 = tpu.iota {dimensions = array<i32: 0>} : vector<16x1xi32>
    %c8_i32 = arith.constant 8 : i32
    %49 = vector.broadcast %c8_i32 : i32 to vector<16x1xi32>
    %50 = arith.cmpi slt, %48, %49 : vector<16x1xi32>
    %cst_19 = arith.constant 0.000000e+00 : f32
    %51 = vector.broadcast %cst_19 : f32 to vector<16x1xf32>
    %52 = arith.subf %51, %47 : vector<16x1xf32>
    %53 = arith.select %50, %52, %47 : vector<16x1xi1>, vector<16x1xf32>
    %cst_20 = arith.constant 0.000000e+00 : f32
    %54 = vector.broadcast %cst_20 : f32 to vector<16x1xf32>
    %55 = arith.maximumf %53, %54 : vector<16x1xf32>
    %56 = math.absf %53 : vector<16x1xf32>
    %cst_21 = arith.constant 0.000000e+00 : f32
    %57 = vector.broadcast %cst_21 : f32 to vector<16x1xf32>
    %58 = arith.subf %57, %56 : vector<16x1xf32>
    %59 = math.exp %58 : vector<16x1xf32>
    %cst_22 = arith.constant 1.000000e+00 : f32
    %60 = vector.broadcast %cst_22 : f32 to vector<16x1xf32>
    %61 = arith.addf %60, %59 : vector<16x1xf32>
    %62 = math.log %61 : vector<16x1xf32>
    %63 = arith.addf %55, %62 : vector<16x1xf32>
    %cst_23 = arith.constant 1.000000e+02 : f32
    %64 = vector.broadcast %cst_23 : f32 to vector<16x1xf32>
    %65 = arith.minimumf %63, %64 : vector<16x1xf32>
    %66 = vector.shape_cast %65 : vector<16x1xf32> to vector<1x16x1xf32>
    %cst_24 = arith.constant dense<0.000000e+00> : vector<1xf32>
    %67 = vector.multi_reduction <add>, %66, %cst_24 [1, 2] : vector<1x16x1xf32> to vector<1xf32>
    %68 = vector.shape_cast %67 : vector<1xf32> to vector<1x1x1xf32>
    %69 = vector.extract %68[0, 0, 0] : f32 from vector<1x1x1xf32>
    %cst_25 = arith.constant 8.000000e+00 : f32
    %70 = arith.divf %69, %cst_25 : f32
    %c0_26 = arith.constant 0 : index
    %71 = memref.load %arg3[%c0_26] : memref<1xf32, #tpu.memory_space<smem>>
    memref.store %70, %arg3[%c0_26] : memref<1xf32, #tpu.memory_space<smem>>
    return
  }
}

</mosaic_0001>

<llo_original>
// kernel: tpu_custom_call.1
$region0: #{tpu_custom_call.1}
  #allocation0 [shape = 'u32[]', space=smem, size = 0x4, offset = 0x4, fixed_abs, tag = 'smem constant byte address 0x4 - core index']
  #allocation1 [shape = 'u32[144,128]{1,0:T(1,128)}', space=vmem, size = 0x12000, scoped, tag = 'internal scratch']
  %s0 = inlined_call_operand.vmem [shape: s32[8,2], index: 0, kind: input, shape index: {}]
  %s1 = inlined_call_operand.vmem [shape: f32[8,13], index: 1, kind: input, shape index: {}]
  %s2 = inlined_call_operand.hbm [shape: f32[15,32], index: 2, kind: input, shape index: {}]
  %s3 = inlined_call_operand.hbm [shape: f32[1], index: 3, kind: output, shape index: {}]
  %s4 = sld [smem:[#allocation0]]
  $region26: #{tpu_custom_call.1} parent=0
    _
  %s6 = ssub.s32 1, %s4
  %s7 = scalar_select 0, %s6, %s4
  $region1: #{tpu_custom_call.1} parent=0
    #allocation2 [shape = 'u8[8192]{0}', space=vmem, size = 0x2000, scoped, tag = 'input window, operand 2, single buffered']
    #allocation3 [shape = 's32[1]{0}', space=sflag, size = 0x4, scoped, tag = 'scoped memory for tpu_custom_call.1']
    #allocation4 [shape = 's32[1]{0}', space=sflag, size = 0x4, scoped, tag = 'scoped memory for tpu_custom_call.1']
    #allocation5 [shape = 'u8[512]{0}', space=smem, size = 0x200, scoped, tag = 'output window, operand 0, single buffered']
    %8 = vsyncpa [#allocation3], 0
    %9 = vsyncpa [#allocation4], 0
    // Predicated region
    $region2: #{tpu_custom_call.1} parent=1 // pred_check
      _
    $region3: #{tpu_custom_call.1} parent=1 // pred_check_branch
      %11 = sbr.rel (0) target = $region5
    $region4: #{tpu_custom_call.1} parent=1 // pred_region
      _
    $region5: #{tpu_custom_call.1} parent=1 // pred_fallthru
      _
    // Predicated region
    $region6: #{tpu_custom_call.1} parent=1 // pred_check
      _
    $region7: #{tpu_custom_call.1} parent=1 // pred_check_branch
      %13 = sbr.rel (0) target = $region9
    $region8: #{tpu_custom_call.1} parent=1 // pred_region
      _
    $region9: #{tpu_custom_call.1} parent=1 // pred_fallthru
      _
    // Predicated region
    $region10: #{tpu_custom_call.1} parent=1 // pred_check
      _
    $region11: #{tpu_custom_call.1} parent=1 // pred_check_branch
      %15 = sbr.rel (0) target = $region13
    $region12: #{tpu_custom_call.1} parent=1 // pred_region
      %s17 = ssub.s32 256, 256
      %18 = vsyncadd [#allocation3], %s17
      %s19 = sshll.u32 [#allocation2], 4
      %s20 = int_to_ptr.vmem [resolvable:$true] %s19
      %25 = dma.hbm_to_vmem [thread:$0]  %s2, 256, %s20, [#allocation3], 128, 128, 8
    $region13: #{tpu_custom_call.1} parent=1 // pred_fallthru
      _
    // Predicated region
    $region14: #{tpu_custom_call.1} parent=1 // pred_check
      _
    $region15: #{tpu_custom_call.1} parent=1 // pred_check_branch
      %27 = sbr.rel (0) target = $region17
    $region16: #{tpu_custom_call.1} parent=1 // pred_region
      %28 = dma.done [#allocation3], 256
    $region17: #{tpu_custom_call.1} parent=1 // pred_fallthru
      _
    %v29 = vld [vmem:[%s1] sm:$0xff]
    %v30 = vlaneseq
    %v31 = vand.u32 %v30, 127
    %v32 = vld [vmem:[%s0] sm:$0xff]
    %33 = vset.pattern.permute.xlu0 0
    %34 = vperm.xlu0 %33, %v32
    %v35 = vpop.permute.xlu0 %34
    %vm36 = vcmp.eq.s32.totalorder %v31, %v35
    %v37 = vsel %vm36, 1.0, 0.0
    %vm38 = vcmask 64512
    %v40 = vsel %vm38, %v37, 0
    %42 = vmatprep.subr.mxu0 0.0
    %43 = vmatpush1.msra.mxu0 0.0
    %44 = vmatprep.subr.mxu0 0.0
    %45 = vmatpush1.msra.mxu0 0.0
    %46 = vmatprep.subr.mxu0 0.0
    %47 = vmatpush1.msra.mxu0 0.0
    %48 = vmatprep.subr.mxu0 0.0
    %49 = vmatpush1.msra.mxu0 0.0
    %50 = vmatprep.subr.mxu0 0.0
    %51 = vmatpush1.msra.mxu0 0.0
    %52 = vmatprep.subr.mxu0 0.0
    %53 = vmatpush1.msra.mxu0 0.0
    %54 = vmatprep.subr.mxu0 0.0
    %55 = vmatpush1.msra.mxu0 0.0
    %56 = vmatprep.subr.mxu0 0.0
    %57 = vmatpush1.msra.mxu0 0.0
    %58 = vmatprep.subr.mxu0 0.0
    %59 = vmatpush1.msra.mxu0 0.0
    %60 = vmatprep.subr.mxu0 0.0
    %61 = vmatpush1.msra.mxu0 0.0
    %62 = vmatprep.subr.mxu0 0.0
    %63 = vmatpush1.msra.mxu0 0.0
    %64 = vmatprep.subr.mxu0 0.0
    %65 = vmatpush1.msra.mxu0 0.0
    %66 = vmatprep.subr.mxu0 0.0
    %67 = vmatpush1.msra.mxu0 0.0
    %68 = vmatprep.subr.mxu0 0.0
    %69 = vmatpush1.msra.mxu0 0.0
    %70 = vmatprep.subr.mxu0 0.0
    %71 = vmatpush1.msra.mxu0 0.0
    %72 = vmatprep.subr.mxu0 0.0
    %73 = vmatpush1.msra.mxu0 %v29
    %74 = vmatprep.subr.mxu0 0.0
    %75 = vmatpush2.msra.mxu0 0.0
    %76 = vmatprep.subr.mxu0 0.0
    %77 = vmatpush2.msra.mxu0 0.0
    %78 = vmatprep.subr.mxu0 0.0
    %79 = vmatpush2.msra.mxu0 0.0
    %80 = vmatprep.subr.mxu0 0.0
    %81 = vmatpush2.msra.mxu0 0.0
    %82 = vmatprep.subr.mxu0 0.0
    %83 = vmatpush2.msra.mxu0 0.0
    %84 = vmatprep.subr.mxu0 0.0
    %85 = vmatpush2.msra.mxu0 0.0
    %86 = vmatprep.subr.mxu0 0.0
    %87 = vmatpush2.msra.mxu0 0.0
    %88 = vmatprep.subr.mxu0 0.0
    %89 = vmatpush2.msra.mxu0 0.0
    %90 = vmatprep.subr.mxu0 0.0
    %91 = vmatpush2.msra.mxu0 0.0
    %92 = vmatprep.subr.mxu0 0.0
    %93 = vmatpush2.msra.mxu0 0.0
    %94 = vmatprep.subr.mxu0 0.0
    %95 = vmatpush2.msra.mxu0 0.0
    %96 = vmatprep.subr.mxu0 0.0
    %97 = vmatpush2.msra.mxu0 0.0
    %98 = vmatprep.subr.mxu0 0.0
    %99 = vmatpush2.msra.mxu0 0.0
    %100 = vmatprep.subr.mxu0 0.0
    %101 = vmatpush2.msra.mxu0 0.0
    %102 = vmatprep.subr.mxu0 0.0
    %103 = vmatpush2.msra.mxu0 0.0
    %104 = vmatprep.subr.mxu0 0.0
    %105 = vmatpush2.msra.mxu0 0.0
    %106 = vmatprep.mubr.f32.mxu0 0.0
    %107 = vmatmul.mubr.f32.gmra.mxu0 %v40
    %v108 = vpop.f32.mrf.mxu0
    %v109 = vadd.f32 0.0, %v108
    %v110 = vpop.f32.mrf.mxu0
    %111 = vdwg.mxu0
    %vm112 = vcmp.lt.s32.totalorder %v31, 0
    %vm113 = vcmp.ge.s32.totalorder %v31, 0
    %vm114 = vcmp.lt.s32.totalorder %v31, 4
    %vm115 = vmand %vm113, %vm114
    %vm116 = vmor %vm112, %vm115
    %v117 = vsel %vm116, %v109, %v29
    %118 = vset.pattern.permute.xlu0 1
    %119 = vperm.xlu0 %118, %v32
    %v120 = vpop.permute.xlu0 %119
    %vm121 = vcmp.eq.s32.totalorder %v31, %v120
    %v122 = vsel %vm121, 1.0, 0.0
    %v124 = vsel %vm38, %v122, 0
    %126 = vmatprep.subr.mxu0 0.0
    %127 = vmatpush1.msra.mxu0 0.0
    %128 = vmatprep.subr.mxu0 0.0
    %129 = vmatpush1.msra.mxu0 0.0
    %130 = vmatprep.subr.mxu0 0.0
    %131 = vmatpush1.msra.mxu0 0.0
    %132 = vmatprep.subr.mxu0 0.0
    %133 = vmatpush1.msra.mxu0 0.0
    %134 = vmatprep.subr.mxu0 0.0
    %135 = vmatpush1.msra.mxu0 0.0
    %136 = vmatprep.subr.mxu0 0.0
    %137 = vmatpush1.msra.mxu0 0.0
    %138 = vmatprep.subr.mxu0 0.0
    %139 = vmatpush1.msra.mxu0 0.0
    %140 = vmatprep.subr.mxu0 0.0
    %141 = vmatpush1.msra.mxu0 0.0
    %142 = vmatprep.subr.mxu0 0.0
    %143 = vmatpush1.msra.mxu0 0.0
    %144 = vmatprep.subr.mxu0 0.0
    %145 = vmatpush1.msra.mxu0 0.0
    %146 = vmatprep.subr.mxu0 0.0
    %147 = vmatpush1.msra.mxu0 0.0
    %148 = vmatprep.subr.mxu0 0.0
    %149 = vmatpush1.msra.mxu0 0.0
    %150 = vmatprep.subr.mxu0 0.0
    %151 = vmatpush1.msra.mxu0 0.0
    %152 = vmatprep.subr.mxu0 0.0
    %153 = vmatpush1.msra.mxu0 0.0
    %154 = vmatprep.subr.mxu0 0.0
    %155 = vmatpush1.msra.mxu0 0.0
    %156 = vmatprep.subr.mxu0 0.0
    %157 = vmatpush1.msra.mxu0 %v29
    %158 = vmatprep.subr.mxu0 0.0
    %159 = vmatpush2.msra.mxu0 0.0
    %160 = vmatprep.subr.mxu0 0.0
    %161 = vmatpush2.msra.mxu0 0.0
    %162 = vmatprep.subr.mxu0 0.0
    %163 = vmatpush2.msra.mxu0 0.0
    %164 = vmatprep.subr.mxu0 0.0
    %165 = vmatpush2.msra.mxu0 0.0
    %166 = vmatprep.subr.mxu0 0.0
    %167 = vmatpush2.msra.mxu0 0.0
    %168 = vmatprep.subr.mxu0 0.0
    %169 = vmatpush2.msra.mxu0 0.0
    %170 = vmatprep.subr.mxu0 0.0
    %171 = vmatpush2.msra.mxu0 0.0
    %172 = vmatprep.subr.mxu0 0.0
    %173 = vmatpush2.msra.mxu0 0.0
    %174 = vmatprep.subr.mxu0 0.0
    %175 = vmatpush2.msra.mxu0 0.0
    %176 = vmatprep.subr.mxu0 0.0
    %177 = vmatpush2.msra.mxu0 0.0
    %178 = vmatprep.subr.mxu0 0.0
    %179 = vmatpush2.msra.mxu0 0.0
    %180 = vmatprep.subr.mxu0 0.0
    %181 = vmatpush2.msra.mxu0 0.0
    %182 = vmatprep.subr.mxu0 0.0
    %183 = vmatpush2.msra.mxu0 0.0
    %184 = vmatprep.subr.mxu0 0.0
    %185 = vmatpush2.msra.mxu0 0.0
    %186 = vmatprep.subr.mxu0 0.0
    %187 = vmatpush2.msra.mxu0 0.0
    %188 = vmatprep.subr.mxu0 0.0
    %189 = vmatpush2.msra.mxu0 0.0
    %190 = vmatprep.mubr.f32.mxu0 0.0
    %191 = vmatmul.mubr.f32.gmra.mxu0 %v124
    %v192 = vpop.f32.mrf.mxu0
    %v193 = vadd.f32 0.0, %v192
    %v194 = vpop.f32.mrf.mxu0
    %195 = vdwg.mxu0
    %vm196 = vcmp.ge.s32.totalorder %v31, 4
    %vm197 = vcmp.lt.s32.totalorder %v31, 12
    %vm198 = vmand %vm196, %vm197
    %vm199 = vmor %vm112, %vm198
    %v200 = vsel %vm199, %v193, %v117
    %v201 = vld [vmem:[#allocation2] sm:$0xff]
    %v202 = vld [vmem:[#allocation2 + $0x8] sm:$0x1f]
    %v203 = vld [vmem:[#allocation2 + $0xd] sm:$0x1]
    %v204 = vld [vmem:[#allocation2 + $0xe] sm:$0x1]
    %vm205 = vcmask 105472
    %v207 = vsel %vm205, %v29, 0
    %v210 = vsel %vm205, %v200, 0
    %vm212 = vcmask 1044480
    %v214 = vsel %vm212, %v202, 0
    %216 = vmatprep.subr.mxu0 0.0
    %217 = vmatpush1.msra.mxu0 0.0
    %218 = vmatprep.subr.mxu0 0.0
    %219 = vmatpush1.msra.mxu0 0.0
    %220 = vmatprep.subr.mxu0 0.0
    %221 = vmatpush1.msra.mxu0 0.0
    %222 = vmatprep.subr.mxu0 0.0
    %223 = vmatpush1.msra.mxu0 0.0
    %224 = vmatprep.subr.mxu0 0.0
    %225 = vmatpush1.msra.mxu0 0.0
    %226 = vmatprep.subr.mxu0 0.0
    %227 = vmatpush1.msra.mxu0 0.0
    %228 = vmatprep.subr.mxu0 0.0
    %229 = vmatpush1.msra.mxu0 0.0
    %230 = vmatprep.subr.mxu0 0.0
    %231 = vmatpush1.msra.mxu0 0.0
    %232 = vmatprep.subr.mxu0 0.0
    %233 = vmatpush1.msra.mxu0 0.0
    %234 = vmatprep.subr.mxu0 0.0
    %235 = vmatpush1.msra.mxu0 0.0
    %236 = vmatprep.subr.mxu0 0.0
    %237 = vmatpush1.msra.mxu0 0.0
    %238 = vmatprep.subr.mxu0 0.0
    %239 = vmatpush1.msra.mxu0 0.0
    %240 = vmatprep.subr.mxu0 0.0
    %241 = vmatpush1.msra.mxu0 0.0
    %242 = vmatprep.subr.mxu0 0.0
    %243 = vmatpush1.msra.mxu0 0.0
    %244 = vmatprep.subr.mxu0 0.0
    %245 = vmatpush1.msra.mxu0 %v214
    %246 = vmatprep.subr.mxu0 0.0
    %247 = vmatpush1.msra.mxu0 %v201
    %248 = vmatprep.subr.mxu0 0.0
    %249 = vmatpush2.msra.mxu0 0.0
    %250 = vmatprep.subr.mxu0 0.0
    %251 = vmatpush2.msra.mxu0 0.0
    %252 = vmatprep.subr.mxu0 0.0
    %253 = vmatpush2.msra.mxu0 0.0
    %254 = vmatprep.subr.mxu0 0.0
    %255 = vmatpush2.msra.mxu0 0.0
    %256 = vmatprep.subr.mxu0 0.0
    %257 = vmatpush2.msra.mxu0 0.0
    %258 = vmatprep.subr.mxu0 0.0
    %259 = vmatpush2.msra.mxu0 0.0
    %260 = vmatprep.subr.mxu0 0.0
    %261 = vmatpush2.msra.mxu0 0.0
    %262 = vmatprep.subr.mxu0 0.0
    %263 = vmatpush2.msra.mxu0 0.0
    %264 = vmatprep.subr.mxu0 0.0
    %265 = vmatpush2.msra.mxu0 0.0
    %266 = vmatprep.subr.mxu0 0.0
    %267 = vmatpush2.msra.mxu0 0.0
    %268 = vmatprep.subr.mxu0 0.0
    %269 = vmatpush2.msra.mxu0 0.0
    %270 = vmatprep.subr.mxu0 0.0
    %271 = vmatpush2.msra.mxu0 0.0
    %272 = vmatprep.subr.mxu0 0.0
    %273 = vmatpush2.msra.mxu0 0.0
    %274 = vmatprep.subr.mxu0 0.0
    %275 = vmatpush2.msra.mxu0 0.0
    %276 = vmatprep.subr.mxu0 0.0
    %277 = vmatpush2.msra.mxu0 0.0
    %278 = vmatprep.subr.mxu0 0.0
    %279 = vmatpush2.msra.mxu0 0.0
    %280 = vmatprep.mubr.f32.mxu0 0.0
    %281 = vmatmul.mubr.f32.gmra.mxu0 %v207
    %v282 = vpop.f32.mrf.mxu0
    %v283 = vadd.f32 0.0, %v282
    %v284 = vpop.f32.mrf.mxu0
    %285 = vmatprep.mubr.f32.mxu0 0.0
    %286 = vmatmul.mubr.f32.gmra.mxu0 %v210
    %v287 = vpop.f32.mrf.mxu0
    %v288 = vadd.f32 0.0, %v287
    %v289 = vpop.f32.mrf.mxu0
    %290 = vdwg.mxu0
    %v291 = vmax.f32 %v283, 0.0
    %v292 = vmax.f32 %v288, 0.0
    %v293 = vlaneseq
    %v294 = vshrl.u32 %v293, 7
    %v295 = vsub.s32 0, %v294
    %v296 = vrot.slane %v203, %v295
    %v297 = vmul.f32 %v291, %v296
    %v298 = vmul.f32 %v292, %v296
    %vm299 = vcmask 261120
    %v300 = vsel %vm299, %v297, 0.0
    %301 = vadd.xlane.f32.xlu0 %v300
    %v302 = vpop.xlane.xlu0 %301
    %v303 = vsel %vm299, %v298, 0.0
    %304 = vadd.xlane.f32.xlu0 %v303
    %v305 = vpop.xlane.xlu0 %304
    %v306 = vlaneseq
    %v307 = vshrl.u32 %v306, 7
    %v308 = vsub.s32 0, %v307
    %v309 = vrot.slane %v204, %v308
    %v310 = vadd.f32 %v302, %v309
    %v311 = vadd.f32 %v305, %v309
    %v312 = vlaneseq
    %v313 = vshrl.u32 %v312, 7
    %v314 = vadd.s32 %v313, 8
    %vm315 = vcmp.lt.s32.totalorder %v313, 8
    %vm316 = vcmp.lt.s32.totalorder %v314, 8
    %v317 = vsub.f32 0.0, %v310
    %v318 = vsub.f32 0.0, %v311
    %v319 = vsel %vm315, %v317, %v310
    %v320 = vsel %vm316, %v318, %v311
    %v321 = vmax.f32 %v319, 0.0
    %v322 = vmax.f32 %v320, 0.0
    %v323 = vand.u32 2147483647, %v319
    %v324 = vand.u32 2147483647, %v320
    %v325 = vsub.f32 0.0, %v323
    %v326 = vsub.f32 0.0, %v324
    %v327 = vmul.f32 %v325, 1.442695
    %v328 = vpow.pop %v327
    %v329 = vmul.f32 %v326, 1.442695
    %v330 = vpow.pop %v329
    %v331 = vadd.f32 %v328, 1.0
    %v332 = vadd.f32 %v330, 1.0
    %v333 = vlog2.pop %v331
    %v334 = vmul.f32 %v333, 0.6931472
    %v335 = vlog2.pop %v332
    %v336 = vmul.f32 %v335, 0.6931472
    %v337 = vadd.f32 %v321, %v334
    %v338 = vadd.f32 %v322, %v336
    %v339 = vmin.f32 %v337, 100.0
    %v340 = vmin.f32 %v338, 100.0
    %vm341 = vcmask 7168
    %v342 = vsel %vm341, %v339, 0.0
    %v343 = vsel %vm341, %v340, 0.0
    %v344 = vadd.f32 %v342, %v343
    %345 = vadd.xlane.f32.xlu0 %v344
    %v346 = vpop.xlane.xlu0 %345
    %v347 = vrot.slane %v346, 4
    %v348 = vadd.f32 %v346, %v347
    %v349 = vrot.slane %v348, 2
    %v350 = vadd.f32 %v348, %v349
    %v351 = vrot.slane %v350, 1
    %v352 = vadd.f32 %v350, %v351
    %s353 = vtos %v352
    %v354 = vrcp.pop 8.0
    %s355 = vtos %v354
    %s356 = smul.f32 %s353, %s355
    %s357 = scalar_lea.smem [#allocation5], 0
    %358 = sst [smem:[%s357]] %s356
    // Predicated region
    $region18: #{tpu_custom_call.1} parent=1 // pred_check
      _
    $region19: #{tpu_custom_call.1} parent=1 // pred_check_branch
      %360 = sbr.rel (0) target = $region21
    $region20: #{tpu_custom_call.1} parent=1 // pred_region
      %s362 = ssub.s32 16, 16
      %363 = vsyncadd [#allocation4], %s362
      %366 = dma.smem_to_hbm [#allocation5], 16, %s3, [#allocation4]
    $region21: #{tpu_custom_call.1} parent=1 // pred_fallthru
      _
    // Predicated region
    $region22: #{tpu_custom_call.1} parent=1 // pred_check
      _
    $region23: #{tpu_custom_call.1} parent=1 // pred_check_branch
      %368 = sbr.rel (0) target = $region25
    $region24: #{tpu_custom_call.1} parent=1 // pred_region
      %369 = dma.done [#allocation4], 16
    $region25: #{tpu_custom_call.1} parent=1 // pred_fallthru
      _
    %370 = sfence
    %371 = vsyncpa [#allocation3], 1
    %372 = vsyncpa [#allocation4], 1

</llo_original>
